<compile_context>
chip_gen: v7x
topology: tpu7x:2x2x1
jax: 0.10.0
libtpu: 0.0.40
codegen_flags: <defaults>
</compile_context>

<pallas_src>
import jax
import jax.numpy as jnp
from jax.experimental import pallas as pl
from jax.experimental.pallas import tpu as pltpu


def _boost_kernel(x_ref, signs_ref, ew_ref, cw_ref, out_ref):
    # x_ref:     VMEM (TC, L, TB)  literal pre-activations (literal-major)
    # signs_ref: VMEM (TC, L, 1)   literal signs per clause
    # ew_ref:    VMEM (TC, 1, TB)  per-ground-clause edge weights
    # cw_ref:    VMEM (TC, 1, 1)   clipped clause weights
    # out_ref:   VMEM (TC, L, TB)  deltas
    signs = signs_ref[...].astype(jnp.float32)                  # (TC, L, 1)
    z = x_ref[...].astype(jnp.float32) * signs                  # (TC, L, TB)

    # Numerically-stable softmax along the literal (sublane) axis, independently
    # per clause and per grounding column.  Garbage in ragged OOB columns/clauses
    # stays confined to those columns and is masked on writeback.
    m = jnp.max(z, axis=1, keepdims=True)                       # (TC, 1, TB)
    p = jnp.exp(z - m)                                          # (TC, L, TB)
    s = jnp.sum(p, axis=1, keepdims=True)                       # (TC, 1, TB)

    # Fused per-grounding scale: clause_weight * edge_weight / sum.  The EUP
    # reciprocal + one Newton step (on the (TC,1,TB) row only) replaces a full
    # (TC,L,TB) divide at ~1-2 ulp from exact f32 division.
    inv = pl.reciprocal(s, approx=True)
    inv = inv * (2.0 - s * inv)
    scale = cw_ref[...].astype(jnp.float32) * ew_ref[...].astype(jnp.float32) * inv

    out_ref[...] = (p * signs * scale).astype(out_ref.dtype)


def _round_up(x, m):
    return ((x + m - 1) // m) * m


def _pick_tiles(C, B, L, x_itemsize, out_itemsize, ew_itemsize, vmem_budget_bytes):
    """Pick (tile_c, tile_b) so each grid step moves MiB-scale DMAs while the
    double-buffered x/out/ew tiles stay inside the VMEM budget."""
    # Double-buffered bytes per grounding column per clause.
    per_lane = 2 * L * (x_itemsize + out_itemsize) + 2 * ew_itemsize
    b_full = _round_up(B, 128)

    # 1) Widen the grounding (lane) tile first: large unmasked 128-multiple DMAs.
    #    Cap at 65536 lanes so large problems still yield several grid steps
    #    (keeps both v7x TensorCores busy) without hurting per-step DMA size.
    tile_b = (vmem_budget_bytes // max(per_lane, 1)) // 128 * 128
    tile_b = int(max(128, min(tile_b, 65536, b_full)))

    # 2) If one clause no longer fills a step (small-B / many-clauses regime),
    #    pack several clauses per step so per-step traffic stays MiB-scale.
    tile_c = 1
    if tile_b >= b_full:
        tile_b = b_full
        per_clause = per_lane * tile_b
        tile_c = int(max(1, min(C, vmem_budget_bytes // max(per_clause, 1))))
    return tile_c, tile_b


def boost_function_literal_major(x_lm, signs, edge_weight, clause_weights,
                                 min_weight, max_weight, *,
                                 tile_b=None, tile_c=None,
                                 vmem_budget_bytes=12 * 1024 * 1024,
                                 vmem_limit_bytes=None):
    """KENN boost deltas for all clauses, literal-major layout (no transposes,
    no padding, no output slice).

    x_lm:           [C, L, B]  pre-activations (literals x groundings)
    signs:          [C, L]     literal signs
    edge_weight:    [C, B]     per-ground-clause weights (any float dtype)
    clause_weights: [C]        clipped to [min_weight, max_weight]
    returns:        [C, L, B]  deltas (dtype of x_lm)
    """
    C, L, B = x_lm.shape
    out_dtype = x_lm.dtype
    ew_arr = jnp.asarray(edge_weight)

    auto_c, auto_b = _pick_tiles(
        C, B, L,
        jnp.dtype(x_lm.dtype).itemsize, jnp.dtype(out_dtype).itemsize,
        jnp.dtype(ew_arr.dtype).itemsize, vmem_budget_bytes)
    tile_b = auto_b if tile_b is None else int(tile_b)
    tile_c = auto_c if tile_c is None else int(tile_c)
    n_c = pl.cdiv(C, tile_c)
    n_b = pl.cdiv(B, tile_b)

    # Tiny (C-sized) parameter glue: clamp clause weights, reshape signs/ew.
    cw = jnp.clip(jnp.asarray(clause_weights, jnp.float32).reshape(C, 1, 1),
                  min_weight, max_weight)
    signs_3d = jnp.asarray(signs, jnp.float32).reshape(C, L, 1)
    ew_3d = ew_arr.reshape(C, 1, B)        # keep caller dtype; upcast in-kernel

    cp_kwargs = dict(dimension_semantics=("parallel", "parallel"))
    if vmem_limit_bytes is not None:
        cp_kwargs["vmem_limit_bytes"] = vmem_limit_bytes

    return pl.pallas_call(
        _boost_kernel,
        out_shape=jax.ShapeDtypeStruct((C, L, B), out_dtype),
        grid_spec=pl.GridSpec(
            grid=(n_c, n_b),
            in_specs=[
                pl.BlockSpec((tile_c, L, tile_b), lambda c, i: (c, 0, i)),  # x
                pl.BlockSpec((tile_c, L, 1),      lambda c, i: (c, 0, 0)),  # signs
                pl.BlockSpec((tile_c, 1, tile_b), lambda c, i: (c, 0, i)),  # edge w
                pl.BlockSpec((tile_c, 1, 1),      lambda c, i: (c, 0, 0)),  # clause w
            ],
            out_specs=pl.BlockSpec((tile_c, L, tile_b), lambda c, i: (c, 0, i)),
        ),
        compiler_params=pltpu.CompilerParams(**cp_kwargs),
    )(x_lm, signs_3d, ew_3d, cw)


def boost_function_batched(selected_predicates, signs, edge_weight,
                           clause_weights, min_weight, max_weight, **kw):
    """[C, B, L] grounding-major API kept for compatibility.

    # TODO(synk): adopt the literal-major [C, L, B] layout end-to-end in the
    # surrounding KENN model; each swapaxes here is an extra HBM pass outside
    # the kernel (use boost_function_literal_major directly to avoid them).
    """
    xT = jnp.swapaxes(selected_predicates, 1, 2)                    # [C, L, B]
    out = boost_function_literal_major(xT, signs, edge_weight, clause_weights,
                                        min_weight, max_weight, **kw)
    return jnp.swapaxes(out, 1, 2)                                   # [C, B, L]


def boost_function(selected_predicates, signs, edge_weight,
                   clause_weight, min_weight, max_weight, **kw):
    """Single-clause forward matching the torch module API.

    selected_predicates: [B, L]; signs: [L]; edge_weight: [B]; clause_weight scalar.
    """
    # TODO(synk): clause_weight Parameter registration / requires_grad handling
    # is training machinery, not part of this forward kernel.
    out = boost_function_batched(
        selected_predicates[None],
        jnp.asarray(signs)[None],
        jnp.asarray(edge_weight)[None],
        jnp.reshape(jnp.asarray(clause_weight, jnp.float32), (1,)),
        min_weight, max_weight, **kw)
    return out[0]


def _reference_single(x, signs, ew, cw, min_w, max_w):
    cwc = jnp.clip(jnp.asarray(cw, jnp.float32), min_w, max_w)
    z = x.astype(jnp.float32) * signs[None, :]
    sm = jax.nn.softmax(z, axis=-1)
    return (cwc * sm * signs[None, :] * ew[:, None]).astype(x.dtype)


if __name__ == "__main__":
    key = jax.random.PRNGKey(0)
    ks = jax.random.split(key, 9)
    min_weight, max_weight = 0.0, 500.0

    # --- single clause, torch-module API -------------------------------------
    B, L = 16, 16
    initial_weight = 0.5
    x = jax.random.normal(ks[0], (B, L), dtype=jnp.float32)
    signs = jnp.where(jax.random.bernoulli(ks[1], 0.5, (L,)), 1.0, -1.0)
    edge_w = jax.random.uniform(ks[2], (B,), minval=0.5, maxval=1.5)

    out = jax.block_until_ready(
        boost_function(x, signs, edge_w, initial_weight, min_weight, max_weight))
    ref = _reference_single(x, signs, edge_w, initial_weight, min_weight, max_weight)
    assert out.shape == (B, L)
    assert jnp.allclose(out, ref, atol=1e-5, rtol=1e-4), "single-clause mismatch"

    # --- many small clauses packed into one step (tile_c > 1), ragged B=40 ---
    C, Bc, Lc = 3, 40, 4
    xc = jax.random.normal(ks[3], (C, Lc, Bc), dtype=jnp.float32)   # literal-major
    signs_c = jnp.where(jax.random.bernoulli(ks[4], 0.5, (C, Lc)), 1.0, -1.0)
    ew_c = jax.random.uniform(ks[5], (C, Bc), minval=0.5, maxval=1.5)
    cw_c = jnp.array([0.5, 700.0, 2.0], jnp.float32)   # 700 gets clipped to 500

    out_c = jax.block_until_ready(
        boost_function_literal_major(xc, signs_c, ew_c, cw_c,
                                     min_weight, max_weight))
    assert out_c.shape == (C, Lc, Bc)
    for c in range(C):
        ref_c = _reference_single(xc[c].T, signs_c[c], ew_c[c], cw_c[c],
                                  min_weight, max_weight).T
        assert jnp.allclose(out_c[c], ref_c, atol=1e-5, rtol=1e-4), \
            f"clause-packed mismatch for clause {c}"

    # --- multi-tile grounding axis with a ragged tail (no pad, masked write) -
    C2, B2, L2 = 2, 300, 4          # 300 = 2*128 + 44: exercises ragged last block
    x2 = jax.random.normal(ks[6], (C2, L2, B2), dtype=jnp.float32)
    signs_2 = jnp.where(jax.random.bernoulli(ks[7], 0.5, (C2, L2)), 1.0, -1.0)
    ew_2 = jax.random.uniform(ks[8], (C2, B2), minval=0.5, maxval=1.5)
    cw_2 = jnp.array([1.5, 3.0], jnp.float32)

    out_2 = jax.block_until_ready(
        boost_function_literal_major(x2, signs_2, ew_2, cw_2,
                                     min_weight, max_weight,
                                     tile_b=128, tile_c=1))
    assert out_2.shape == (C2, L2, B2)
    for c in range(C2):
        ref_2 = _reference_single(x2[c].T, signs_2[c], ew_2[c], cw_2[c],
                                  min_weight, max_weight).T
        assert jnp.allclose(out_2[c], ref_2, atol=1e-5, rtol=1e-4), \
            f"ragged multi-tile mismatch for clause {c}"

    print("KERNEL_OK")
</pallas_src>

<mosaic_0001>
module attributes {stable_mosaic.version = 11 : i64} {
  func.func @_boost_kernel(%arg0: i32, %arg1: i32, %arg2: memref<1x16x128xf32, #tpu.memory_space<vmem>>, %arg3: memref<1x16x1xf32, #tpu.memory_space<vmem>>, %arg4: memref<1x1x128xf32, #tpu.memory_space<vmem>>, %arg5: memref<1x1x1xf32, #tpu.memory_space<vmem>>, %arg6: memref<1x16x128xf32, #tpu.memory_space<vmem>>) attributes {dimension_semantics = [#tpu.dimension_semantics<parallel>, #tpu.dimension_semantics<parallel>], iteration_bounds = array<i64: 1, 1>, scalar_prefetch = 0 : i64, scratch_operands = 0 : i64, tpu.core_type = #tpu.core_type<tc>, window_params = [{transform_indices = @transform_0, window_bounds = array<i64: 1, 16, 128>}, {transform_indices = @transform_1, window_bounds = array<i64: 1, 16, 1>}, {transform_indices = @transform_2, window_bounds = array<i64: 1, 1, 128>}, {transform_indices = @transform_3, window_bounds = array<i64: 1, 1, 1>}, {transform_indices = @transform_4, window_bounds = array<i64: 1, 16, 128>}]} {
    %c0 = arith.constant 0 : index
    %c0_0 = arith.constant 0 : index
    %c0_1 = arith.constant 0 : index
    %0 = vector.load %arg3[%c0, %c0_0, %c0_1] : memref<1x16x1xf32, #tpu.memory_space<vmem>>, vector<1x16x1xf32>
    %c0_2 = arith.constant 0 : index
    %c0_3 = arith.constant 0 : index
    %c0_4 = arith.constant 0 : index
    %1 = vector.load %arg2[%c0_2, %c0_3, %c0_4] : memref<1x16x128xf32, #tpu.memory_space<vmem>>, vector<1x16x128xf32>
    %2 = vector.broadcast %0 : vector<1x16x1xf32> to vector<1x16x128xf32>
    %3 = arith.mulf %1, %2 : vector<1x16x128xf32>
    %cst = arith.constant dense<0xFF800000> : vector<1x128xf32>
    %4 = vector.multi_reduction <maximumf>, %3, %cst [1] : vector<1x16x128xf32> to vector<1x128xf32>
    %5 = vector.shape_cast %4 : vector<1x128xf32> to vector<1x1x128xf32>
    %6 = vector.broadcast %5 : vector<1x1x128xf32> to vector<1x16x128xf32>
    %7 = arith.subf %3, %6 : vector<1x16x128xf32>
    %8 = math.exp %7 : vector<1x16x128xf32>
    %cst_5 = arith.constant dense<0.000000e+00> : vector<1x128xf32>
    %9 = vector.multi_reduction <add>, %8, %cst_5 [1] : vector<1x16x128xf32> to vector<1x128xf32>
    %10 = vector.shape_cast %9 : vector<1x128xf32> to vector<1x1x128xf32>
    %11 = tpu.reciprocal %10 {approx = true} : vector<1x1x128xf32> -> vector<1x1x128xf32>
    %12 = arith.mulf %10, %11 : vector<1x1x128xf32>
    %cst_6 = arith.constant 2.000000e+00 : f32
    %13 = vector.broadcast %cst_6 : f32 to vector<1x1x128xf32>
    %14 = arith.subf %13, %12 : vector<1x1x128xf32>
    %15 = arith.mulf %11, %14 : vector<1x1x128xf32>
    %c0_7 = arith.constant 0 : index
    %c0_8 = arith.constant 0 : index
    %c0_9 = arith.constant 0 : index
    %16 = vector.load %arg5[%c0_7, %c0_8, %c0_9] : memref<1x1x1xf32, #tpu.memory_space<vmem>>, vector<1x1x1xf32>
    %c0_10 = arith.constant 0 : index
    %c0_11 = arith.constant 0 : index
    %c0_12 = arith.constant 0 : index
    %17 = vector.load %arg4[%c0_10, %c0_11, %c0_12] : memref<1x1x128xf32, #tpu.memory_space<vmem>>, vector<1x1x128xf32>
    %18 = vector.broadcast %16 : vector<1x1x1xf32> to vector<1x1x128xf32>
    %19 = arith.mulf %18, %17 : vector<1x1x128xf32>
    %20 = arith.mulf %19, %15 : vector<1x1x128xf32>
    %21 = vector.broadcast %0 : vector<1x16x1xf32> to vector<1x16x128xf32>
    %22 = arith.mulf %8, %21 : vector<1x16x128xf32>
    %23 = vector.broadcast %20 : vector<1x1x128xf32> to vector<1x16x128xf32>
    %24 = arith.mulf %22, %23 : vector<1x16x128xf32>
    %c0_13 = arith.constant 0 : index
    %c0_14 = arith.constant 0 : index
    %c0_15 = arith.constant 0 : index
    %25 = vector.load %arg6[%c0_13, %c0_14, %c0_15] : memref<1x16x128xf32, #tpu.memory_space<vmem>>, vector<1x16x128xf32>
    tpu.vector_store %arg6[%c0_13, %c0_14, %c0_15], %24 {strides = array<i32>} : memref<1x16x128xf32, #tpu.memory_space<vmem>>, vector<1x16x128xf32>,
    return
  }
  func.func @transform_0(%arg0: i32, %arg1: i32) -> (i32, i32, i32) {
    %c0_i32 = arith.constant 0 : i32
    %c0_i32_0 = arith.constant 0 : i32
    return %arg0, %c0_i32, %arg1 : i32, i32, i32
  }
  func.func @transform_1(%arg0: i32, %arg1: i32) -> (i32, i32, i32) {
    %c0_i32 = arith.constant 0 : i32
    %c0_i32_0 = arith.constant 0 : i32
    %c0_i32_1 = arith.constant 0 : i32
    return %arg0, %c0_i32, %c0_i32_0 : i32, i32, i32
  }
  func.func @transform_2(%arg0: i32, %arg1: i32) -> (i32, i32, i32) {
    %c0_i32 = arith.constant 0 : i32
    %c0_i32_0 = arith.constant 0 : i32
    return %arg0, %c0_i32, %arg1 : i32, i32, i32
  }
  func.func @transform_3(%arg0: i32, %arg1: i32) -> (i32, i32, i32) {
    %c0_i32 = arith.constant 0 : i32
    %c0_i32_0 = arith.constant 0 : i32
    %c0_i32_1 = arith.constant 0 : i32
    return %arg0, %c0_i32, %c0_i32_0 : i32, i32, i32
  }
  func.func @transform_4(%arg0: i32, %arg1: i32) -> (i32, i32, i32) {
    %c0_i32 = arith.constant 0 : i32
    %c0_i32_0 = arith.constant 0 : i32
    return %arg0, %c0_i32, %arg1 : i32, i32, i32
  }
}

</mosaic_0001>

<llo_original>
// kernel: tpu_custom_call.1
$region0: #{tpu_custom_call.1}
  #allocation0 [shape = 'u32[]', space=smem, size = 0x4, offset = 0x4, fixed_abs, tag = 'smem constant byte address 0x4 - core index']
  #allocation1 [shape = 'u32[144,128]{1,0:T(1,128)}', space=vmem, size = 0x12000, scoped, tag = 'internal scratch']
  #allocation2 [shape = 'f32[1,1,1]{2,1,0:T(1,128)S(1)}', space=vmem, size = 0x200, scoped, tag = 'scoped memory for tpu_custom_call.1']
  %s0 = inlined_call_operand.vmem [shape: f32[1,16,16], index: 0, kind: input, shape index: {}]
  %s1 = inlined_call_operand.vmem [shape: f32[1,16,1], index: 1, kind: input, shape index: {}]
  %s2 = inlined_call_operand.vmem [shape: f32[1,1,16], index: 2, kind: input, shape index: {}]
  %s3 = inlined_call_operand.<no memory space> [shape: f32[1,1,1], index: 3, kind: input, shape index: {}]
  %s4 = inlined_call_operand.hbm [shape: f32[1,16,16], index: 4, kind: output, shape index: {}]
  %s5 = sld [smem:[#allocation0]]
  $region26: #{tpu_custom_call.1} parent=0
    _
  %s7 = ssub.s32 1, %s5
  %s8 = scalar_select 0, %s7, %s5
  %v9 = vstv %s3
  %10 = vst [vmem:[#allocation2] sm:$0x1] %v9
  $region1: #{tpu_custom_call.1} parent=0
    #allocation3 [shape = 'u8[8192]{0}', space=vmem, size = 0x2000, scoped, tag = 'output window, operand 0, single buffered']
    #allocation4 [shape = 's32[1]{0}', space=sflag, size = 0x4, scoped, tag = 'scoped memory for tpu_custom_call.1']
    %11 = vsyncpa [#allocation4], 0
    // Predicated region
    $region2: #{tpu_custom_call.1} parent=1 // pred_check
      _
    $region3: #{tpu_custom_call.1} parent=1 // pred_check_branch
      %13 = sbr.rel (0) target = $region5
    $region4: #{tpu_custom_call.1} parent=1 // pred_region
      _
    $region5: #{tpu_custom_call.1} parent=1 // pred_fallthru
      _
    // Predicated region
    $region6: #{tpu_custom_call.1} parent=1 // pred_check
      _
    $region7: #{tpu_custom_call.1} parent=1 // pred_check_branch
      %15 = sbr.rel (0) target = $region9
    $region8: #{tpu_custom_call.1} parent=1 // pred_region
      _
    $region9: #{tpu_custom_call.1} parent=1 // pred_fallthru
      _
    // Predicated region
    $region10: #{tpu_custom_call.1} parent=1 // pred_check
      _
    $region11: #{tpu_custom_call.1} parent=1 // pred_check_branch
      %17 = sbr.rel (0) target = $region13
    $region12: #{tpu_custom_call.1} parent=1 // pred_region
      _
    $region13: #{tpu_custom_call.1} parent=1 // pred_fallthru
      _
    // Predicated region
    $region14: #{tpu_custom_call.1} parent=1 // pred_check
      _
    $region15: #{tpu_custom_call.1} parent=1 // pred_check_branch
      %19 = sbr.rel (0) target = $region17
    $region16: #{tpu_custom_call.1} parent=1 // pred_region
      _
    $region17: #{tpu_custom_call.1} parent=1 // pred_fallthru
      _
    %v20 = vld [vmem:[%s1] sm:$0xff]
    %v21 = vld [vmem:[%s1 + $0x8] sm:$0xff]
    %v22 = vld [vmem:[%s0] sm:$0xff]
    %v23 = vld [vmem:[%s0 + $0x8] sm:$0xff]
    %25 = vset.pattern.permute.xlu0 0
    %26 = vperm.xlu0 %25, %v20
    %v27 = vpop.permute.xlu0 %26
    %30 = vset.pattern.permute.xlu0 0
    %31 = vperm.xlu0 %30, %v21
    %v32 = vpop.permute.xlu0 %31
    %v34 = vmul.f32 %v22, %v27
    %v35 = vmul.f32 %v23, %v32
    %v36 = vmax.f32 %v34, %v35
    %v37 = vrot.slane %v36, 4
    %v38 = vmax.f32 %v36, %v37
    %v39 = vrot.slane %v38, 2
    %v40 = vmax.f32 %v38, %v39
    %v41 = vrot.slane %v40, 1
    %v42 = vmax.f32 %v40, %v41
    %v43 = vsub.f32 %v34, %v42
    %v44 = vsub.f32 %v35, %v42
    %v45 = vmul.f32 %v43, 1.442695
    %v46 = vpow.pop %v45
    %v47 = vmul.f32 %v44, 1.442695
    %v48 = vpow.pop %v47
    %v49 = vadd.f32 %v46, %v48
    %v50 = vrot.slane %v49, 4
    %v51 = vadd.f32 %v49, %v50
    %v52 = vrot.slane %v51, 2
    %v53 = vadd.f32 %v51, %v52
    %v54 = vrot.slane %v53, 1
    %v55 = vadd.f32 %v53, %v54
    %v56 = vrcp.pop %v55
    %v57 = vmul.f32 %v55, %v56
    %v58 = vsub.f32 2.0, %v57
    %v59 = vmul.f32 %v56, %v58
    %v60 = vld [vmem:[#allocation2] sm:$0x1]
    %v61 = vld [vmem:[%s2] sm:$0x1]
    %63 = vset.pattern.permute.xlu0 0
    %64 = vperm.xlu0 %63, %v60
    %v65 = vpop.permute.xlu0 %64
    %v67 = vlaneseq
    %v68 = vshrl.u32 %v67, 7
    %v69 = vsub.s32 0, %v68
    %v70 = vrot.slane %v65, %v69
    %v71 = vmul.f32 %v70, %v61
    %v72 = vmul.f32 %v71, %v59
    %v73 = vmul.f32 %v46, %v27
    %v74 = vmul.f32 %v48, %v32
    %v76 = vlaneseq
    %v77 = vshrl.u32 %v76, 7
    %v78 = vsub.s32 0, %v77
    %v79 = vrot.slane %v72, %v78
    %v81 = vmul.f32 %v73, %v79
    %v82 = vmul.f32 %v74, %v79
    %83 = vst [vmem:[#allocation3] sm:$0xff] %v81
    %84 = vst [vmem:[#allocation3 + $0x8] sm:$0xff] %v82
    // Predicated region
    $region18: #{tpu_custom_call.1} parent=1 // pred_check
      _
    $region19: #{tpu_custom_call.1} parent=1 // pred_check_branch
      %86 = sbr.rel (0) target = $region21
    $region20: #{tpu_custom_call.1} parent=1 // pred_region
      %s88 = ssub.s32 256, 256
      %89 = vsyncadd [#allocation4], %s88
      %s90 = sshll.u32 [#allocation3], 4
      %s91 = int_to_ptr.vmem [resolvable:$true] %s90
      %96 = dma.vmem_to_hbm [thread:$0]  %s91, 256, %s4, [#allocation4], 128, 128, 8
    $region21: #{tpu_custom_call.1} parent=1 // pred_fallthru
      _
    // Predicated region
    $region22: #{tpu_custom_call.1} parent=1 // pred_check
      _
    $region23: #{tpu_custom_call.1} parent=1 // pred_check_branch
      %98 = sbr.rel (0) target = $region25
    $region24: #{tpu_custom_call.1} parent=1 // pred_region
      %99 = dma.done [#allocation4], 256
    $region25: #{tpu_custom_call.1} parent=1 // pred_fallthru
      _
    %100 = vsyncpa [#allocation4], 1

</llo_original>
